<compile_context>
chip_gen: v5e
topology: v5e:2x2
jax: 0.10.0
libtpu: 0.0.40
codegen_flags: <defaults>
</compile_context>

<pallas_src>
import jax
import jax.numpy as jnp
from jax.experimental import pallas as pl
from jax.experimental.pallas import tpu as pltpu

LANE = 128
SUBLANE = 16  # multiple-of-16 batch tiles are layout-safe for bf16 inputs and f32 outputs


def _round_up(x, m):
    return (x + m - 1) // m * m


def _pad_to(arr, shape):
    return jnp.pad(arr, [(0, t - s) for s, t in zip(arr.shape, shape)])


def qnetwork_kernel(x_ref, w1_ref, b1_ref, w2_ref, b2_ref, w3_ref, b3_ref, o_ref):
    """Fused 3-layer MLP forward for one batch tile, entirely in VMEM.

    bf16 MXU inputs, f32 accumulation; bias + ReLU on the f32 accumulator.
    """
    h = jnp.dot(x_ref[...], w1_ref[...], preferred_element_type=jnp.float32)
    h = jnp.maximum(h + b1_ref[...], 0.0)

    h = jnp.dot(h.astype(jnp.bfloat16), w2_ref[...],
                preferred_element_type=jnp.float32)
    h = jnp.maximum(h + b2_ref[...], 0.0)

    # Final layer is only 8 lanes wide -> the store is a small masked vst, but the
    # HBM writeback is 8 lanes/row instead of 128.
    o = jnp.dot(h.astype(jnp.bfloat16), w3_ref[...],
                preferred_element_type=jnp.float32)
    o_ref[...] = (o + b3_ref[...]).astype(o_ref.dtype)


def init_params(key, state_size, action_size, hidden_sizes):
    """Deterministic synthetic init (uniform, like PyTorch's default Linear init).

    Weights stored as [in_features, out_features] (transposed vs. PyTorch storage).
    """
    sizes = [state_size] + list(hidden_sizes) + [action_size]
    params = {}
    for i, (fan_in, fan_out) in enumerate(zip(sizes[:-1], sizes[1:]), start=1):
        key, kw, kb = jax.random.split(key, 3)
        bound = 1.0 / (fan_in ** 0.5)
        params[f"w{i}"] = jax.random.uniform(
            kw, (fan_in, fan_out), jnp.float32, -bound, bound)
        params[f"b{i}"] = jax.random.uniform(
            kb, (1, fan_out), jnp.float32, -bound, bound)
    return params


def prepare_params(params):
    """Pad hidden feature dims to 128 lanes; pad the output layer to only 8 lanes.

    Zero padding keeps the math exact: padded hidden lanes are relu(0 + 0) = 0 and
    padded weight rows multiply those zeros. Weights bf16, biases f32.
    """
    n_layers = len(params) // 2
    assert n_layers == 3, "kernel is specialized for 2 hidden layers + output"
    prepared = {}
    for i in range(1, n_layers + 1):
        w = params[f"w{i}"]
        b = params[f"b{i}"]
        fan_in, fan_out = w.shape
        in_pad = fan_in if i == 1 else _round_up(fan_in, LANE)
        # Only the hidden layers need lane-dense (128) outputs; the final layer
        # output goes straight to HBM, so keep it at 8 lanes to minimize writeback.
        out_pad = _round_up(fan_out, 8) if i == n_layers else _round_up(fan_out, LANE)
        prepared[f"w{i}"] = _pad_to(w, (in_pad, out_pad)).astype(jnp.bfloat16)
        prepared[f"b{i}"] = _pad_to(b, (1, out_pad)).astype(jnp.float32)
    return prepared


def _choose_tile(B, tb):
    """Pick a batch tile: multiple of 16; for large B, an even tile count (v7x megacore)."""
    tb = max(_round_up(tb, SUBLANE), SUBLANE)
    b_aligned = _round_up(max(B, 1), SUBLANE)
    if b_aligned <= tb:
        return b_aligned                      # single tile for small batches
    n_tiles = _round_up(pl.cdiv(b_aligned, tb), 2)   # even -> both TCs on v7x
    return _round_up(pl.cdiv(b_aligned, n_tiles), SUBLANE)


def qnetwork_forward(x, prepared, action_size, *, tb=2048):
    """Run the fused QNetwork forward pass via a batch-tiled pallas_call.

    x: [B, state_size] (any float dtype; cast to bf16 here); prepared: prepare_params().
    Returns: [B, action_size] float32.
    """
    B, S = x.shape
    H1p = prepared["w1"].shape[1]
    H2p = prepared["w2"].shape[1]
    Ap = prepared["w3"].shape[1]
    assert prepared["w1"].shape[0] == S

    x_bf = x if x.dtype == jnp.bfloat16 else x.astype(jnp.bfloat16)

    TB = _choose_tile(B, tb)
    grid = (pl.cdiv(B, TB),)   # ragged last block: OOB reads are per-row garbage,
                               # OOB writes masked; rows are independent so this is safe.

    out = pl.pallas_call(
        qnetwork_kernel,
        out_shape=jax.ShapeDtypeStruct((B, Ap), jnp.float32),
        grid=grid,
        in_specs=[
            pl.BlockSpec((TB, S), lambda i: (i, 0)),     # x tile (pipelined)
            pl.BlockSpec((S, H1p), lambda i: (0, 0)),    # weights/biases stay resident
            pl.BlockSpec((1, H1p), lambda i: (0, 0)),
            pl.BlockSpec((H1p, H2p), lambda i: (0, 0)),
            pl.BlockSpec((1, H2p), lambda i: (0, 0)),
            pl.BlockSpec((H2p, Ap), lambda i: (0, 0)),
            pl.BlockSpec((1, Ap), lambda i: (0, 0)),
        ],
        out_specs=pl.BlockSpec((TB, Ap), lambda i: (i, 0)),   # [TB, 8] f32 writeback
        compiler_params=pltpu.CompilerParams(
            dimension_semantics=("parallel",),   # batch axis -> both TCs on v7x
        ),
    )(x_bf, prepared["w1"], prepared["b1"], prepared["w2"], prepared["b2"],
      prepared["w3"], prepared["b3"])

    return out[:, :action_size]


def reference_forward(x, params):
    """Pure-JAX f32 reference mirroring the PyTorch forward semantics."""
    h = jnp.maximum(x @ params["w1"] + params["b1"], 0.0)
    h = jnp.maximum(h @ params["w2"] + params["b2"], 0.0)
    return h @ params["w3"] + params["b3"]


if __name__ == "__main__":
    # Shapes consistent with the module: state_size=8, action_size=4, hidden=[64,64].
    state_size, action_size = 8, 4
    hidden_sizes = [64, 64]

    key = jax.random.PRNGKey(0)
    key, kx_small, kx_big = jax.random.split(key, 3)
    params = init_params(key, state_size, action_size, hidden_sizes)
    prepared = prepare_params(params)

    # Small demo batch (single ragged block).
    x_small = jax.random.normal(kx_small, (8, state_size), jnp.float32)
    out_small = jax.block_until_ready(qnetwork_forward(x_small, prepared, action_size))
    ref_small = reference_forward(x_small, params)
    assert out_small.shape == (8, action_size)
    # bf16 matmul inputs with f32 accumulation -> compare vs f32 ref at loose tolerance.
    assert jnp.allclose(out_small, ref_small, atol=5e-2, rtol=5e-2), "small-batch mismatch"

    # Larger, non-multiple batch: default tile (single step) ...
    x_big = jax.random.normal(kx_big, (300, state_size), jnp.float32)
    out_big = jax.block_until_ready(qnetwork_forward(x_big, prepared, action_size))
    ref_big = reference_forward(x_big, params)
    assert out_big.shape == (300, action_size)
    assert jnp.allclose(out_big, ref_big, atol=5e-2, rtol=5e-2), "large-batch mismatch"

    # ... and a small tb override to exercise a multi-step grid with a ragged last block.
    out_big_tiled = jax.block_until_ready(
        qnetwork_forward(x_big, prepared, action_size, tb=96))
    assert out_big_tiled.shape == (300, action_size)
    assert jnp.allclose(out_big_tiled, ref_big, atol=5e-2, rtol=5e-2), "tiled-batch mismatch"

    print("KERNEL_OK")
</pallas_src>

<mosaic_0001>
module attributes {stable_mosaic.version = 11 : i64} {
  func.func @qnetwork_kernel(%arg0: i32, %arg1: memref<16x8xbf16, #tpu.memory_space<vmem>>, %arg2: memref<8x128xbf16, #tpu.memory_space<vmem>>, %arg3: memref<1x128xf32, #tpu.memory_space<vmem>>, %arg4: memref<128x128xbf16, #tpu.memory_space<vmem>>, %arg5: memref<1x128xf32, #tpu.memory_space<vmem>>, %arg6: memref<128x8xbf16, #tpu.memory_space<vmem>>, %arg7: memref<1x8xf32, #tpu.memory_space<vmem>>, %arg8: memref<16x8xf32, #tpu.memory_space<vmem>>) attributes {dimension_semantics = [#tpu.dimension_semantics<parallel>], iteration_bounds = array<i64: 1>, scalar_prefetch = 0 : i64, scratch_operands = 0 : i64, tpu.core_type = #tpu.core_type<tc>, window_params = [{transform_indices = @transform_0, window_bounds = array<i64: 16, 8>}, {pipeline_mode = #tpu.pipeline_mode<synchronous>, transform_indices = @transform_1, window_bounds = array<i64: 8, 128>}, {pipeline_mode = #tpu.pipeline_mode<synchronous>, transform_indices = @transform_2, window_bounds = array<i64: 1, 128>}, {pipeline_mode = #tpu.pipeline_mode<synchronous>, transform_indices = @transform_3, window_bounds = array<i64: 128, 128>}, {pipeline_mode = #tpu.pipeline_mode<synchronous>, transform_indices = @transform_4, window_bounds = array<i64: 1, 128>}, {pipeline_mode = #tpu.pipeline_mode<synchronous>, transform_indices = @transform_5, window_bounds = array<i64: 128, 8>}, {pipeline_mode = #tpu.pipeline_mode<synchronous>, transform_indices = @transform_6, window_bounds = array<i64: 1, 8>}, {transform_indices = @transform_7, window_bounds = array<i64: 16, 8>}]} {
    %c0 = arith.constant 0 : index
    %c0_0 = arith.constant 0 : index
    %0 = vector.load %arg1[%c0, %c0_0] : memref<16x8xbf16, #tpu.memory_space<vmem>>, vector<16x8xbf16>
    %c0_1 = arith.constant 0 : index
    %c0_2 = arith.constant 0 : index
    %1 = vector.load %arg2[%c0_1, %c0_2] : memref<8x128xbf16, #tpu.memory_space<vmem>>, vector<8x128xbf16>
    %cst = arith.constant dense<0.000000e+00> : vector<16x128xf32>
    %2 = tpu.matmul %0, %1, %cst {dimension_numbers = #tpu.dot_dimension_numbers<[1], [0], [0], [1], [0, 0, 1, 1], [], []>} : vector<16x8xbf16>, vector<8x128xbf16>, vector<16x128xf32> -> vector<16x128xf32>
    %c0_3 = arith.constant 0 : index
    %c0_4 = arith.constant 0 : index
    %3 = vector.load %arg3[%c0_3, %c0_4] : memref<1x128xf32, #tpu.memory_space<vmem>>, vector<1x128xf32>
    %4 = vector.broadcast %3 : vector<1x128xf32> to vector<16x128xf32>
    %5 = arith.addf %2, %4 : vector<16x128xf32>
    %cst_5 = arith.constant 0.000000e+00 : f32
    %6 = vector.broadcast %cst_5 : f32 to vector<16x128xf32>
    %7 = arith.maximumf %5, %6 : vector<16x128xf32>
    %8 = arith.truncf %7 : vector<16x128xf32> to vector<16x128xbf16>
    %c0_6 = arith.constant 0 : index
    %c0_7 = arith.constant 0 : index
    %9 = vector.load %arg4[%c0_6, %c0_7] : memref<128x128xbf16, #tpu.memory_space<vmem>>, vector<128x128xbf16>
    %cst_8 = arith.constant dense<0.000000e+00> : vector<16x128xf32>
    %10 = tpu.matmul %8, %9, %cst_8 {dimension_numbers = #tpu.dot_dimension_numbers<[1], [0], [0], [1], [0, 0, 1, 1], [], []>} : vector<16x128xbf16>, vector<128x128xbf16>, vector<16x128xf32> -> vector<16x128xf32>
    %c0_9 = arith.constant 0 : index
    %c0_10 = arith.constant 0 : index
    %11 = vector.load %arg5[%c0_9, %c0_10] : memref<1x128xf32, #tpu.memory_space<vmem>>, vector<1x128xf32>
    %12 = vector.broadcast %11 : vector<1x128xf32> to vector<16x128xf32>
    %13 = arith.addf %10, %12 : vector<16x128xf32>
    %cst_11 = arith.constant 0.000000e+00 : f32
    %14 = vector.broadcast %cst_11 : f32 to vector<16x128xf32>
    %15 = arith.maximumf %13, %14 : vector<16x128xf32>
    %16 = arith.truncf %15 : vector<16x128xf32> to vector<16x128xbf16>
    %c0_12 = arith.constant 0 : index
    %c0_13 = arith.constant 0 : index
    %17 = vector.load %arg6[%c0_12, %c0_13] : memref<128x8xbf16, #tpu.memory_space<vmem>>, vector<128x8xbf16>
    %cst_14 = arith.constant dense<0.000000e+00> : vector<16x8xf32>
    %18 = tpu.matmul %16, %17, %cst_14 {dimension_numbers = #tpu.dot_dimension_numbers<[1], [0], [0], [1], [0, 0, 1, 1], [], []>} : vector<16x128xbf16>, vector<128x8xbf16>, vector<16x8xf32> -> vector<16x8xf32>
    %c0_15 = arith.constant 0 : index
    %c0_16 = arith.constant 0 : index
    %19 = vector.load %arg7[%c0_15, %c0_16] : memref<1x8xf32, #tpu.memory_space<vmem>>, vector<1x8xf32>
    %20 = vector.broadcast %19 : vector<1x8xf32> to vector<16x8xf32>
    %21 = arith.addf %18, %20 : vector<16x8xf32>
    %c0_17 = arith.constant 0 : index
    %c0_18 = arith.constant 0 : index
    %22 = vector.load %arg8[%c0_17, %c0_18] : memref<16x8xf32, #tpu.memory_space<vmem>>, vector<16x8xf32>
    tpu.vector_store %arg8[%c0_17, %c0_18], %21 {strides = array<i32>} : memref<16x8xf32, #tpu.memory_space<vmem>>, vector<16x8xf32>,
    return
  }
  func.func @transform_0(%arg0: i32) -> (i32, i32) {
    %c0_i32 = arith.constant 0 : i32
    %c0_i32_0 = arith.constant 0 : i32
    return %arg0, %c0_i32 : i32, i32
  }
  func.func @transform_1(%arg0: i32) -> (i32, i32) {
    %c0_i32 = arith.constant 0 : i32
    %c0_i32_0 = arith.constant 0 : i32
    %c0_i32_1 = arith.constant 0 : i32
    return %c0_i32, %c0_i32_0 : i32, i32
  }
  func.func @transform_2(%arg0: i32) -> (i32, i32) {
    %c0_i32 = arith.constant 0 : i32
    %c0_i32_0 = arith.constant 0 : i32
    %c0_i32_1 = arith.constant 0 : i32
    return %c0_i32, %c0_i32_0 : i32, i32
  }
  func.func @transform_3(%arg0: i32) -> (i32, i32) {
    %c0_i32 = arith.constant 0 : i32
    %c0_i32_0 = arith.constant 0 : i32
    %c0_i32_1 = arith.constant 0 : i32
    return %c0_i32, %c0_i32_0 : i32, i32
  }
  func.func @transform_4(%arg0: i32) -> (i32, i32) {
    %c0_i32 = arith.constant 0 : i32
    %c0_i32_0 = arith.constant 0 : i32
    %c0_i32_1 = arith.constant 0 : i32
    return %c0_i32, %c0_i32_0 : i32, i32
  }
  func.func @transform_5(%arg0: i32) -> (i32, i32) {
    %c0_i32 = arith.constant 0 : i32
    %c0_i32_0 = arith.constant 0 : i32
    %c0_i32_1 = arith.constant 0 : i32
    return %c0_i32, %c0_i32_0 : i32, i32
  }
  func.func @transform_6(%arg0: i32) -> (i32, i32) {
    %c0_i32 = arith.constant 0 : i32
    %c0_i32_0 = arith.constant 0 : i32
    %c0_i32_1 = arith.constant 0 : i32
    return %c0_i32, %c0_i32_0 : i32, i32
  }
  func.func @transform_7(%arg0: i32) -> (i32, i32) {
    %c0_i32 = arith.constant 0 : i32
    %c0_i32_0 = arith.constant 0 : i32
    return %arg0, %c0_i32 : i32, i32
  }
}

</mosaic_0001>

<llo_original>
// kernel: tpu_custom_call.1
$region0: #{tpu_custom_call.1}
  #allocation0 [shape = 'u32[]', space=smem, size = 0x4, offset = 0x4, fixed_abs, tag = 'smem constant byte address 0x4 - core index']
  #allocation1 [shape = 'u32[72,128]{1,0:T(1,128)}', space=vmem, size = 0x9000, scoped, tag = 'internal scratch']
  %s0 = inlined_call_operand.vmem [shape: bf16[8,8], index: 0, kind: input, shape index: {}]
  %s1 = inlined_call_operand.hbm [shape: bf16[8,128], index: 1, kind: input, shape index: {}]
  %s2 = inlined_call_operand.hbm [shape: f32[1,128], index: 2, kind: input, shape index: {}]
  %s3 = inlined_call_operand.vmem [shape: bf16[128,128], index: 3, kind: input, shape index: {}]
  %s4 = inlined_call_operand.hbm [shape: f32[1,128], index: 4, kind: input, shape index: {}]
  %s5 = inlined_call_operand.vmem [shape: bf16[128,8], index: 5, kind: input, shape index: {}]
  %s6 = inlined_call_operand.vmem [shape: f32[1,8], index: 6, kind: input, shape index: {}]
  %s7 = inlined_call_operand.hbm [shape: f32[8,8], index: 7, kind: output, shape index: {}]
  %s8 = sld [smem:[#allocation0]]
  $region50: #{tpu_custom_call.1} parent=0
    _
  %s10 = ssub.s32 1, %s8
  %s11 = scalar_select 0, %s10, %s8
  $region1: #{tpu_custom_call.1} parent=0
    #allocation2 [shape = 'u8[2048]{0}', space=vmem, size = 0x800, scoped, tag = 'input window, operand 1, single buffered']
    #allocation3 [shape = 's32[1]{0}', space=sflag, size = 0x4, scoped, tag = 'scoped memory for tpu_custom_call.1']
    #allocation4 [shape = 's32[1]{0}', space=sflag, size = 0x4, scoped, tag = 'scoped memory for tpu_custom_call.1']
    #allocation5 [shape = 'u8[512]{0}', space=vmem, size = 0x400, scoped, tag = 'input window, operand 2, single buffered']
    #allocation6 [shape = 's32[1]{0}', space=sflag, size = 0x4, scoped, tag = 'scoped memory for tpu_custom_call.1']
    #allocation7 [shape = 'u8[512]{0}', space=vmem, size = 0x400, scoped, tag = 'input window, operand 4, single buffered']
    #allocation8 [shape = 'u8[8192]{0}', space=vmem, size = 0x2000, scoped, tag = 'output window, operand 0, single buffered']
    %12 = vsyncpa [#allocation3], 0
    %13 = vsyncpa [#allocation6], 0
    %14 = vsyncpa [#allocation4], 0
    // Predicated region
    $region2: #{tpu_custom_call.1} parent=1 // pred_check
      _
    $region3: #{tpu_custom_call.1} parent=1 // pred_check_branch
      %16 = sbr.rel (0) target = $region5
    $region4: #{tpu_custom_call.1} parent=1 // pred_region
      _
    $region5: #{tpu_custom_call.1} parent=1 // pred_fallthru
      _
    // Predicated region
    $region6: #{tpu_custom_call.1} parent=1 // pred_check
      _
    $region7: #{tpu_custom_call.1} parent=1 // pred_check_branch
      %18 = sbr.rel (0) target = $region9
    $region8: #{tpu_custom_call.1} parent=1 // pred_region
      %20 = vsyncadd [#allocation3], 0
      %s22 = sshll.u32 %s1, 4
      %s23 = int_to_ptr.hbm [resolvable:$true] %s22
      %s24 = sshll.u32 [#allocation2], 4
      %s25 = int_to_ptr.vmem [resolvable:$true] %s24
      %27 = dma.hbm_to_vmem [thread:$0]  %s23, 64, %s25, [#allocation3]
    $region9: #{tpu_custom_call.1} parent=1 // pred_fallthru
      _
    // Predicated region
    $region10: #{tpu_custom_call.1} parent=1 // pred_check
      _
    $region11: #{tpu_custom_call.1} parent=1 // pred_check_branch
      %29 = sbr.rel (0) target = $region13
    $region12: #{tpu_custom_call.1} parent=1 // pred_region
      %31 = vsyncadd [#allocation6], 0
      %s33 = sshll.u32 %s2, 4
      %s34 = int_to_ptr.hbm [resolvable:$true] %s33
      %s35 = sshll.u32 [#allocation5], 4
      %s36 = int_to_ptr.vmem [resolvable:$true] %s35
      %38 = dma.hbm_to_vmem [thread:$0]  %s34, 16, %s36, [#allocation6]
    $region13: #{tpu_custom_call.1} parent=1 // pred_fallthru
      _
    // Predicated region
    $region14: #{tpu_custom_call.1} parent=1 // pred_check
      _
    $region15: #{tpu_custom_call.1} parent=1 // pred_check_branch
      %40 = sbr.rel (0) target = $region17
    $region16: #{tpu_custom_call.1} parent=1 // pred_region
      _
    $region17: #{tpu_custom_call.1} parent=1 // pred_fallthru
      _
    // Predicated region
    $region18: #{tpu_custom_call.1} parent=1 // pred_check
      _
    $region19: #{tpu_custom_call.1} parent=1 // pred_check_branch
      %42 = sbr.rel (0) target = $region21
    $region20: #{tpu_custom_call.1} parent=1 // pred_region
      %44 = vsyncadd [#allocation6], 0
      %s46 = sshll.u32 %s4, 4
      %s47 = int_to_ptr.hbm [resolvable:$true] %s46
      %s48 = sshll.u32 [#allocation7], 4
      %s49 = int_to_ptr.vmem [resolvable:$true] %s48
      %51 = dma.hbm_to_vmem [thread:$0]  %s47, 16, %s49, [#allocation6]
    $region21: #{tpu_custom_call.1} parent=1 // pred_fallthru
      _
    // Predicated region
    $region22: #{tpu_custom_call.1} parent=1 // pred_check
      _
    $region23: #{tpu_custom_call.1} parent=1 // pred_check_branch
      %53 = sbr.rel (0) target = $region25
    $region24: #{tpu_custom_call.1} parent=1 // pred_region
      _
    $region25: #{tpu_custom_call.1} parent=1 // pred_fallthru
      _
    // Predicated region
    $region26: #{tpu_custom_call.1} parent=1 // pred_check
      _
    $region27: #{tpu_custom_call.1} parent=1 // pred_check_branch
      %55 = sbr.rel (0) target = $region29
    $region28: #{tpu_custom_call.1} parent=1 // pred_region
      _
    $region29: #{tpu_custom_call.1} parent=1 // pred_fallthru
      _
    // Predicated region
    $region30: #{tpu_custom_call.1} parent=1 // pred_check
      _
    $region31: #{tpu_custom_call.1} parent=1 // pred_check_branch
      %57 = sbr.rel (0) target = $region33
    $region32: #{tpu_custom_call.1} parent=1 // pred_region
      %59 = dma.done [#allocation3], 64
    $region33: #{tpu_custom_call.1} parent=1 // pred_fallthru
      _
    // Predicated region
    $region34: #{tpu_custom_call.1} parent=1 // pred_check
      _
    $region35: #{tpu_custom_call.1} parent=1 // pred_check_branch
      %61 = sbr.rel (0) target = $region37
    $region36: #{tpu_custom_call.1} parent=1 // pred_region
      %63 = dma.done [#allocation6], 16
    $region37: #{tpu_custom_call.1} parent=1 // pred_fallthru
      _
    // Predicated region
    $region38: #{tpu_custom_call.1} parent=1 // pred_check
      _
    $region39: #{tpu_custom_call.1} parent=1 // pred_check_branch
      %65 = sbr.rel (0) target = $region41
    $region40: #{tpu_custom_call.1} parent=1 // pred_region
      %67 = dma.done [#allocation6], 16
    $region41: #{tpu_custom_call.1} parent=1 // pred_fallthru
      _
    %v69 = vld [vmem:[%s0] sm:$0xf]
    %v70 = vld [vmem:[%s0 + $0x4] sm:$0xf]
    %v71 = vld [vmem:[#allocation2] sm:$0xf]
    %v72 = vld [vmem:[#allocation5] sm:$0x1]
    %v74 = vperm.slane %v72, 0
    %v78 = vunpack.c.l.b16 %v69
    %v79 = vunpack.c.l.b16 %v70
    %v80 = vpack.c.b16 %v79, %v78
    %vm81 = vcmask 64512
    %v83 = vsel %vm81, %v80, 0
    %vm85 = vcmask 1043456
    %v87 = vsel %vm85, %v71, 0
    %89 = vmatpush.bf16.msra.mxu0 0
    %90 = vmatpush.bf16.msra.mxu0 0
    %91 = vmatpush.bf16.msra.mxu0 0
    %92 = vmatpush.bf16.msra.mxu0 0
    %93 = vmatpush.bf16.msra.mxu0 0
    %94 = vmatpush.bf16.msra.mxu0 0
    %95 = vmatpush.bf16.msra.mxu0 0
    %96 = vmatpush.bf16.msra.mxu0 %v87
    %97 = vmatmul.bf16.gmra.mxu0 %v83
    %v98 = vpop.f32.mrf.mxu0
    %v99 = vadd.f32 %v74, %v98
    %v100 = vpop.f32.mrf.mxu0
    %v101 = vadd.f32 %v74, %v100
    %102 = vdwg.mxu0
    %v103 = vmax.f32 %v99, 0.0
    %v104 = vmax.f32 %v101, 0.0
    %v105 = vpack.c.bf16 %v104, %v103
    %v106 = vld [vmem:[%s3] sm:$0xf]
    %v107 = vld [vmem:[%s3 + $0x4] sm:$0xf]
    %v108 = vld [vmem:[%s3 + $0x8] sm:$0xf]
    %v109 = vld [vmem:[%s3 + $0xc] sm:$0xf]
    %v110 = vld [vmem:[%s3 + $0x10] sm:$0xf]
    %v111 = vld [vmem:[%s3 + $0x14] sm:$0xf]
    %v112 = vld [vmem:[%s3 + $0x18] sm:$0xf]
    %v113 = vld [vmem:[%s3 + $0x1c] sm:$0xf]
    %v114 = vld [vmem:[%s3 + $0x20] sm:$0xf]
    %v115 = vld [vmem:[%s3 + $0x24] sm:$0xf]
    %v116 = vld [vmem:[%s3 + $0x28] sm:$0xf]
    %v117 = vld [vmem:[%s3 + $0x2c] sm:$0xf]
    %v118 = vld [vmem:[%s3 + $0x30] sm:$0xf]
    %v119 = vld [vmem:[%s3 + $0x34] sm:$0xf]
    %v120 = vld [vmem:[%s3 + $0x38] sm:$0xf]
    %v121 = vld [vmem:[%s3 + $0x3c] sm:$0xf]
    %v122 = vld [vmem:[#allocation7] sm:$0x1]
    %v124 = vperm.slane %v122, 0
    %v142 = vunpack.c.l.b16 %v106
    %v143 = vunpack.c.l.b16 %v107
    %v144 = vunpack.c.l.b16 %v108
    %v145 = vunpack.c.l.b16 %v109
    %v146 = vunpack.c.l.b16 %v110
    %v147 = vunpack.c.l.b16 %v111
    %v148 = vunpack.c.l.b16 %v112
    %v149 = vunpack.c.l.b16 %v113
    %v150 = vunpack.c.l.b16 %v114
    %v151 = vunpack.c.l.b16 %v115
    %v152 = vunpack.c.l.b16 %v116
    %v153 = vunpack.c.l.b16 %v117
    %v154 = vunpack.c.l.b16 %v118
    %v155 = vunpack.c.l.b16 %v119
    %v156 = vunpack.c.l.b16 %v120
    %v157 = vunpack.c.l.b16 %v121
    %v158 = vpack.c.b16 %v143, %v142
    %v159 = vpack.c.b16 %v145, %v144
    %v160 = vpack.c.b16 %v147, %v146
    %v161 = vpack.c.b16 %v149, %v148
    %v162 = vpack.c.b16 %v151, %v150
    %v163 = vpack.c.b16 %v153, %v152
    %v164 = vpack.c.b16 %v155, %v154
    %v165 = vpack.c.b16 %v157, %v156
    %174 = vmatpush.bf16.msra.mxu0 %v165
    %175 = vmatpush.bf16.msra.mxu0 %v164
    %176 = vmatpush.bf16.msra.mxu0 %v163
    %177 = vmatpush.bf16.msra.mxu0 %v162
    %178 = vmatpush.bf16.msra.mxu0 %v161
    %179 = vmatpush.bf16.msra.mxu0 %v160
    %180 = vmatpush.bf16.msra.mxu0 %v159
    %181 = vmatpush.bf16.msra.mxu0 %v158
    %182 = vmatmul.bf16.gmra.mxu0 %v105
    %v183 = vpop.f32.mrf.mxu0
    %v184 = vadd.f32 %v124, %v183
    %v185 = vpop.f32.mrf.mxu0
    %v186 = vadd.f32 %v124, %v185
    %187 = vdwg.mxu0
    %v188 = vmax.f32 %v184, 0.0
    %v189 = vmax.f32 %v186, 0.0
    %v190 = vpack.c.bf16 %v189, %v188
    %v191 = vld [vmem:[%s5] sm:$0xf]
    %v192 = vld [vmem:[%s5 + $0x4] sm:$0xf]
    %v193 = vld [vmem:[%s5 + $0x8] sm:$0xf]
    %v194 = vld [vmem:[%s5 + $0xc] sm:$0xf]
    %v195 = vld [vmem:[%s5 + $0x10] sm:$0xf]
    %v196 = vld [vmem:[%s5 + $0x14] sm:$0xf]
    %v197 = vld [vmem:[%s5 + $0x18] sm:$0xf]
    %v198 = vld [vmem:[%s5 + $0x1c] sm:$0xf]
    %v199 = vld [vmem:[%s5 + $0x20] sm:$0xf]
    %v200 = vld [vmem:[%s5 + $0x24] sm:$0xf]
    %v201 = vld [vmem:[%s5 + $0x28] sm:$0xf]
    %v202 = vld [vmem:[%s5 + $0x2c] sm:$0xf]
    %v203 = vld [vmem:[%s5 + $0x30] sm:$0xf]
    %v204 = vld [vmem:[%s5 + $0x34] sm:$0xf]
    %v205 = vld [vmem:[%s5 + $0x38] sm:$0xf]
    %v206 = vld [vmem:[%s5 + $0x3c] sm:$0xf]
    %v207 = vld [vmem:[%s6] sm:$0x1]
    %v209 = vperm.slane %v207, 0
    %v227 = vunpack.c.l.b16 %v191
    %v228 = vunpack.c.l.b16 %v192
    %v229 = vunpack.c.l.b16 %v193
    %v230 = vunpack.c.l.b16 %v194
    %v231 = vunpack.c.l.b16 %v195
    %v232 = vunpack.c.l.b16 %v196
    %v233 = vunpack.c.l.b16 %v197
    %v234 = vunpack.c.l.b16 %v198
    %v235 = vunpack.c.l.b16 %v199
    %v236 = vunpack.c.l.b16 %v200
    %v237 = vunpack.c.l.b16 %v201
    %v238 = vunpack.c.l.b16 %v202
    %v239 = vunpack.c.l.b16 %v203
    %v240 = vunpack.c.l.b16 %v204
    %v241 = vunpack.c.l.b16 %v205
    %v242 = vunpack.c.l.b16 %v206
    %v243 = vpack.c.b16 %v228, %v227
    %v244 = vpack.c.b16 %v230, %v229
    %v245 = vpack.c.b16 %v232, %v231
    %v246 = vpack.c.b16 %v234, %v233
    %v247 = vpack.c.b16 %v236, %v235
    %v248 = vpack.c.b16 %v238, %v237
    %v249 = vpack.c.b16 %v240, %v239
    %v250 = vpack.c.b16 %v242, %v241
    %259 = vmatpush.bf16.msra.mxu0 %v250
    %260 = vmatpush.bf16.msra.mxu0 %v249
    %261 = vmatpush.bf16.msra.mxu0 %v248
    %262 = vmatpush.bf16.msra.mxu0 %v247
    %263 = vmatpush.bf16.msra.mxu0 %v246
    %264 = vmatpush.bf16.msra.mxu0 %v245
    %265 = vmatpush.bf16.msra.mxu0 %v244
    %266 = vmatpush.bf16.msra.mxu0 %v243
    %267 = vmatmul.bf16.gmra.mxu0 %v190
    %v268 = vpop.f32.mrf.mxu0
    %v269 = vadd.f32 %v209, %v268
    %v270 = vpop.f32.mrf.mxu0
    %v271 = vadd.f32 %v209, %v270
    %272 = vdwg.mxu0
    %273 = vst.msk [vmem:[#allocation8] sm:$0xff] %vm81, %v269
    %274 = vst.msk [vmem:[#allocation8 + $0x8] sm:$0xff] %vm81, %v271
    // Predicated region
    $region42: #{tpu_custom_call.1} parent=1 // pred_check
      _
    $region43: #{tpu_custom_call.1} parent=1 // pred_check_branch
      %276 = sbr.rel (0) target = $region45
    $region44: #{tpu_custom_call.1} parent=1 // pred_region
      %278 = vsyncadd [#allocation4], 128
      %s279 = sshll.u32 [#allocation8], 4
      %s280 = int_to_ptr.vmem [resolvable:$true] %s279
      %s281 = sshll.u32 %s7, 4
      %s282 = int_to_ptr.hbm [resolvable:$true] %s281
      %287 = dma.vmem_to_hbm [thread:$0]  %s280, 128, %s282, [#allocation4], 128, 128, 8
    $region45: #{tpu_custom_call.1} parent=1 // pred_fallthru
      _
    // Predicated region
    $region46: #{tpu_custom_call.1} parent=1 // pred_check
      _
    $region47: #{tpu_custom_call.1} parent=1 // pred_check_branch
      %289 = sbr.rel (0) target = $region49
    $region48: #{tpu_custom_call.1} parent=1 // pred_region
      %291 = dma.done [#allocation4], 256
    $region49: #{tpu_custom_call.1} parent=1 // pred_fallthru
      _
    %292 = vsyncpa [#allocation3], 1
    %293 = vsyncpa [#allocation6], 1
    %294 = vsyncpa [#allocation4], 1

</llo_original>
